<compile_context>
chip_gen: v5e
topology: v5e:2x2
jax: 0.10.0
libtpu: 0.0.40
codegen_flags: <defaults>
</compile_context>

<pallas_src>
import functools

import jax
import jax.numpy as jnp
import numpy as np
from jax import lax
from jax.experimental import pallas as pl
from jax.experimental.pallas import tpu as pltpu


# ---------------------------------------------------------------------------
# Fused Pallas kernel: conv3x3+ReLU -> conv3x3+ReLU -> deconv2x2(s2)+ReLU
# ---------------------------------------------------------------------------
def _fused_unit_kernel(x_ref, w1_ref, b1_ref, w2_ref, b2_ref, wd_ref, bd_ref,
                       o_ref):
    """One batch sample per grid step; everything stays VMEM-resident."""
    h_in = x_ref.shape[1]
    ho1 = h_in - 2          # rows after conv1
    ho2 = h_in - 4          # rows after conv2 (== deconv input rows)

    x = x_ref[0]            # (H, W*Cin) bf16, lane-dense

    # --- conv1 + ReLU : (ho1, Wo1*C) ------------------------------------
    acc = jnp.dot(x[0:ho1, :], w1_ref[0], preferred_element_type=jnp.float32)
    acc += jnp.dot(x[1:ho1 + 1, :], w1_ref[1], preferred_element_type=jnp.float32)
    acc += jnp.dot(x[2:ho1 + 2, :], w1_ref[2], preferred_element_type=jnp.float32)
    a1 = jnp.maximum(acc + b1_ref[...], 0.0).astype(jnp.bfloat16)

    # --- conv2 + ReLU : (ho2, Wo2*C) ------------------------------------
    acc = jnp.dot(a1[0:ho2, :], w2_ref[0], preferred_element_type=jnp.float32)
    acc += jnp.dot(a1[1:ho2 + 1, :], w2_ref[1], preferred_element_type=jnp.float32)
    acc += jnp.dot(a1[2:ho2 + 2, :], w2_ref[2], preferred_element_type=jnp.float32)
    a2 = jnp.maximum(acc + b2_ref[...], 0.0).astype(jnp.bfloat16)

    # --- transposed conv (k=2, s=2) + ReLU : (ho2, 2 * 2*Wo2 * C) --------
    # Columns: dy*(Wup*C) + u*C + co  (both row parities side by side; taps
    # do not overlap, so per-column bias + ReLU is exact).
    up = jnp.dot(a2, wd_ref[...], preferred_element_type=jnp.float32)
    o_ref[0] = jnp.maximum(up + bd_ref[...], 0.0)      # 384-lane unmasked store


# ---------------------------------------------------------------------------
# Band-matrix weight construction (folds dx taps + channels + width crop)
# ---------------------------------------------------------------------------
def _conv_band(w_oihw, width):
    """PyTorch (Cout, Cin, KH, KW) -> (KH, W*Cin, Wo*Cout) banded matrices."""
    cout, cin, kh, kw = w_oihw.shape
    wo = width - kw + 1
    win = np.arange(width)[:, None, None]
    dx = np.arange(kw)[None, :, None]
    woi = np.arange(wo)[None, None, :]
    scatter = jnp.asarray((win == woi + dx).astype(np.float32))       # (W,KW,Wo)
    band = jnp.einsum("wxv,oidx->dwivo", scatter, w_oihw.astype(jnp.float32),
                      precision=lax.Precision.HIGHEST)
    return band.reshape(kh, width * cin, wo * cout)


def _deconv_band(w_iohw, width):
    """PyTorch ConvTranspose (Cin, Cout, KH, KW) -> (W*Cin, KH*KW*W*Cout)."""
    cin, cout, kh, kw = w_iohw.shape
    wu = kw * width                                                    # upsampled
    win = np.arange(width)[:, None, None]
    dx = np.arange(kw)[None, :, None]
    u = np.arange(wu)[None, None, :]
    scatter = jnp.asarray((u == kw * win + dx).astype(np.float32))    # (W,KW,Wu)
    band = jnp.einsum("wxu,iodx->widuo", scatter, w_iohw.astype(jnp.float32),
                      precision=lax.Precision.HIGHEST)
    return band.reshape(width * cin, kh * wu * cout)


# ---------------------------------------------------------------------------
# Forward pass (layout glue in JAX, all compute in the fused Pallas kernel)
# ---------------------------------------------------------------------------
def expansive_unit1_forward(params, x_nchw, y_nchw):
    B, cin, H, W = x_nchw.shape
    cout = params["conv1_w"].shape[0]
    ho1, wo1 = H - 2, W - 2
    ho2, wo2 = H - 4, W - 4
    h_up, w_up = 2 * ho2, 2 * wo2

    # lane-dense bf16 activation: (B, H, W*Cin)
    x = jnp.transpose(x_nchw, (0, 2, 3, 1)).reshape(B, H, W * cin)
    x = x.astype(jnp.bfloat16)

    w1 = _conv_band(params["conv1_w"], W).astype(jnp.bfloat16)         # (3, W*Cin, Wo1*C)
    b1 = jnp.tile(params["conv1_b"].astype(jnp.float32), wo1)[None, :]
    w2 = _conv_band(params["conv2_w"], wo1).astype(jnp.bfloat16)       # (3, Wo1*C, Wo2*C)
    b2 = jnp.tile(params["conv2_b"].astype(jnp.float32), wo2)[None, :]
    wd = _deconv_band(params["dc_w"], wo2).astype(jnp.bfloat16)        # (Wo2*C, 2*Wup*C)
    bd = jnp.tile(params["dc_b"].astype(jnp.float32), 2 * w_up)[None, :]
    n_out = wd.shape[1]                                                # 2 * Wup * C

    out = pl.pallas_call(
        _fused_unit_kernel,
        out_shape=jax.ShapeDtypeStruct((B, ho2, n_out), jnp.float32),
        grid_spec=pltpu.PrefetchScalarGridSpec(
            num_scalar_prefetch=0,
            grid=(B,),                                   # >= 2 parallel steps
            in_specs=[
                pl.BlockSpec((1, H, W * cin), lambda b: (b, 0, 0)),
                pl.BlockSpec(w1.shape, lambda b: (0, 0, 0)),
                pl.BlockSpec(b1.shape, lambda b: (0, 0)),
                pl.BlockSpec(w2.shape, lambda b: (0, 0, 0)),
                pl.BlockSpec(b2.shape, lambda b: (0, 0)),
                pl.BlockSpec(wd.shape, lambda b: (0, 0)),
                pl.BlockSpec(bd.shape, lambda b: (0, 0)),
            ],
            out_specs=pl.BlockSpec((1, ho2, n_out), lambda b: (b, 0, 0)),
        ),
        compiler_params=pltpu.CompilerParams(
            dimension_semantics=("parallel",),
            # actual padded, double-buffered footprint is < 1 MiB; 8 MiB is
            # safe on v5e/v6e (128 MiB) and v7x (64 MiB) alike.
            vmem_limit_bytes=8 * 1024 * 1024,
        ),
    )(x, w1, b1, w2, b2, wd, bd)

    # (B, ho2, 2*Wup*C) with cols dy*(Wup*C)+u*C+co -> (B, 2*ho2, Wup, C):
    # contiguous reshape interleaves the two row parities (row = 2h + dy).
    up = out.reshape(B, h_up, w_up, cout)
    up = jnp.transpose(up, (0, 3, 1, 2))                 # NCHW, float32

    # center-crop the skip tensor (exact PyTorch indexing) and concat channels
    Hy, Wy = y_nchw.shape[2], y_nchw.shape[3]
    hs, he = int(Hy / 2 - h_up / 2), int(Hy / 2 + h_up / 2)
    ws, we = int(Wy / 2 - w_up / 2), int(Wy / 2 + w_up / 2)
    y = y_nchw[:, :, hs:he, ws:we].astype(up.dtype)
    return jnp.concatenate([up, y], axis=1)


# ---------------------------------------------------------------------------
# Pure-JAX reference (same per-layer bf16 operand quantization)
# ---------------------------------------------------------------------------
def _reference_forward(params, x_nchw, y_nchw):
    q = lambda a: a.astype(jnp.bfloat16).astype(jnp.float32)

    def conv(x, w, b):
        o = lax.conv_general_dilated(
            q(x), q(w), window_strides=(1, 1), padding="VALID",
            dimension_numbers=("NCHW", "OIHW", "NCHW"),
            precision=lax.Precision.HIGHEST)
        return jnp.maximum(o + b[None, :, None, None], 0.0)

    def deconv(x, w, b):
        o = jnp.einsum("nchw,cokl->nohwkl", q(x), q(w),
                       precision=lax.Precision.HIGHEST)
        nb, co, H, W, _, _ = o.shape
        o = o.transpose(0, 1, 2, 4, 3, 5).reshape(nb, co, 2 * H, 2 * W)
        return jnp.maximum(o + b[None, :, None, None], 0.0)

    x = conv(x_nchw, params["conv1_w"], params["conv1_b"])
    x = conv(x, params["conv2_w"], params["conv2_b"])
    x = deconv(x, params["dc_w"], params["dc_b"])
    size = x.shape[2]
    Hy, Wy = y_nchw.shape[2], y_nchw.shape[3]
    hs, ws = int(Hy / 2 - size / 2), int(Wy / 2 - size / 2)
    y = y_nchw[:, :, hs:hs + size, ws:ws + size]
    return jnp.concatenate([x, y.astype(x.dtype)], axis=1)


# ---------------------------------------------------------------------------
# Deterministic parameter init (PyTorch weight layouts)
# ---------------------------------------------------------------------------
def init_params(key, in_channels, out_channels):
    k = jax.random.split(key, 6)
    return {
        "conv1_w": jax.random.normal(k[0], (out_channels, in_channels, 3, 3),
                                     jnp.float32) * np.sqrt(2.0 / (9 * in_channels)),
        "conv1_b": 0.01 * jax.random.normal(k[1], (out_channels,), jnp.float32),
        "conv2_w": jax.random.normal(k[2], (out_channels, out_channels, 3, 3),
                                     jnp.float32) * np.sqrt(2.0 / (9 * out_channels)),
        "conv2_b": 0.01 * jax.random.normal(k[3], (out_channels,), jnp.float32),
        "dc_w": jax.random.normal(k[4], (out_channels, out_channels, 2, 2),
                                  jnp.float32) * np.sqrt(2.0 / (4 * out_channels)),
        "dc_b": 0.01 * jax.random.normal(k[5], (out_channels,), jnp.float32),
    }


if __name__ == "__main__":
    IN_CH, OUT_CH = 4, 8
    key = jax.random.PRNGKey(0)
    kp, kx, ky = jax.random.split(key, 3)
    params = init_params(kp, IN_CH, OUT_CH)

    # x: (2, 4, 16, 16) -> conv 14 -> conv 12 -> deconv 24
    # y skip: (2, 8, 28, 28) -> center-cropped to 24x24, concat -> 16 channels
    x = jax.random.normal(kx, (2, IN_CH, 16, 16), jnp.float32)
    y = jax.random.normal(ky, (2, OUT_CH, 28, 28), jnp.float32)

    fwd = jax.jit(expansive_unit1_forward)
    out = fwd(params, x, y)
    jax.block_until_ready(out)

    assert out.shape == (2, 2 * OUT_CH, 24, 24), out.shape
    assert bool(jnp.all(jnp.isfinite(out)))

    ref = _reference_forward(params, x, y)
    rel_err = float(jnp.max(jnp.abs(out - ref)) / (jnp.max(jnp.abs(ref)) + 1e-6))
    assert rel_err < 3e-2, f"numerical mismatch vs reference: rel_err={rel_err}"

    print("KERNEL_OK")
</pallas_src>

<mosaic_0001>
module attributes {stable_mosaic.version = 11 : i64} {
  func.func @_fused_unit_kernel(%arg0: i32, %arg1: memref<1x16x64xbf16, #tpu.memory_space<vmem>>, %arg2: memref<3x64x112xbf16, #tpu.memory_space<vmem>>, %arg3: memref<1x112xf32, #tpu.memory_space<vmem>>, %arg4: memref<3x112x96xbf16, #tpu.memory_space<vmem>>, %arg5: memref<1x96xf32, #tpu.memory_space<vmem>>, %arg6: memref<96x384xbf16, #tpu.memory_space<vmem>>, %arg7: memref<1x384xf32, #tpu.memory_space<vmem>>, %arg8: memref<1x12x384xf32, #tpu.memory_space<vmem>>) attributes {dimension_semantics = [#tpu.dimension_semantics<parallel>], iteration_bounds = array<i64: 2>, scalar_prefetch = 0 : i64, scratch_operands = 0 : i64, tpu.core_type = #tpu.core_type<tc>, window_params = [{transform_indices = @transform_0, window_bounds = array<i64: 1, 16, 64>}, {pipeline_mode = #tpu.pipeline_mode<synchronous>, transform_indices = @transform_1, window_bounds = array<i64: 3, 64, 112>}, {pipeline_mode = #tpu.pipeline_mode<synchronous>, transform_indices = @transform_2, window_bounds = array<i64: 1, 112>}, {pipeline_mode = #tpu.pipeline_mode<synchronous>, transform_indices = @transform_3, window_bounds = array<i64: 3, 112, 96>}, {pipeline_mode = #tpu.pipeline_mode<synchronous>, transform_indices = @transform_4, window_bounds = array<i64: 1, 96>}, {pipeline_mode = #tpu.pipeline_mode<synchronous>, transform_indices = @transform_5, window_bounds = array<i64: 96, 384>}, {pipeline_mode = #tpu.pipeline_mode<synchronous>, transform_indices = @transform_6, window_bounds = array<i64: 1, 384>}, {transform_indices = @transform_7, window_bounds = array<i64: 1, 12, 384>}]} {
    %c0 = arith.constant 0 : index
    %c0_0 = arith.constant 0 : index
    %c0_1 = arith.constant 0 : index
    %0 = vector.load %arg1[%c0, %c0_0, %c0_1] : memref<1x16x64xbf16, #tpu.memory_space<vmem>>, vector<1x16x64xbf16>
    %1 = vector.shape_cast %0 : vector<1x16x64xbf16> to vector<16x64xbf16>
    %2 = vector.extract_strided_slice %1 {offsets = [0, 0], sizes = [14, 64], strides = [1, 1]} : vector<16x64xbf16> to vector<14x64xbf16>
    %c0_2 = arith.constant 0 : index
    %c0_3 = arith.constant 0 : index
    %c0_4 = arith.constant 0 : index
    %3 = vector.load %arg2[%c0_2, %c0_3, %c0_4] : memref<3x64x112xbf16, #tpu.memory_space<vmem>>, vector<1x64x112xbf16>
    %4 = vector.shape_cast %3 : vector<1x64x112xbf16> to vector<64x112xbf16>
    %cst = arith.constant dense<0.000000e+00> : vector<14x112xf32>
    %5 = tpu.matmul %2, %4, %cst {dimension_numbers = #tpu.dot_dimension_numbers<[1], [0], [0], [1], [0, 0, 1, 1], [], []>} : vector<14x64xbf16>, vector<64x112xbf16>, vector<14x112xf32> -> vector<14x112xf32>
    %6 = vector.extract_strided_slice %1 {offsets = [1, 0], sizes = [14, 64], strides = [1, 1]} : vector<16x64xbf16> to vector<14x64xbf16>
    %c1 = arith.constant 1 : index
    %c0_5 = arith.constant 0 : index
    %c0_6 = arith.constant 0 : index
    %7 = vector.load %arg2[%c1, %c0_5, %c0_6] : memref<3x64x112xbf16, #tpu.memory_space<vmem>>, vector<1x64x112xbf16>
    %8 = vector.shape_cast %7 : vector<1x64x112xbf16> to vector<64x112xbf16>
    %cst_7 = arith.constant dense<0.000000e+00> : vector<14x112xf32>
    %9 = tpu.matmul %6, %8, %cst_7 {dimension_numbers = #tpu.dot_dimension_numbers<[1], [0], [0], [1], [0, 0, 1, 1], [], []>} : vector<14x64xbf16>, vector<64x112xbf16>, vector<14x112xf32> -> vector<14x112xf32>
    %10 = arith.addf %5, %9 : vector<14x112xf32>
    %11 = vector.extract_strided_slice %1 {offsets = [2, 0], sizes = [14, 64], strides = [1, 1]} : vector<16x64xbf16> to vector<14x64xbf16>
    %c2 = arith.constant 2 : index
    %c0_8 = arith.constant 0 : index
    %c0_9 = arith.constant 0 : index
    %12 = vector.load %arg2[%c2, %c0_8, %c0_9] : memref<3x64x112xbf16, #tpu.memory_space<vmem>>, vector<1x64x112xbf16>
    %13 = vector.shape_cast %12 : vector<1x64x112xbf16> to vector<64x112xbf16>
    %cst_10 = arith.constant dense<0.000000e+00> : vector<14x112xf32>
    %14 = tpu.matmul %11, %13, %cst_10 {dimension_numbers = #tpu.dot_dimension_numbers<[1], [0], [0], [1], [0, 0, 1, 1], [], []>} : vector<14x64xbf16>, vector<64x112xbf16>, vector<14x112xf32> -> vector<14x112xf32>
    %15 = arith.addf %10, %14 : vector<14x112xf32>
    %c0_11 = arith.constant 0 : index
    %c0_12 = arith.constant 0 : index
    %16 = vector.load %arg3[%c0_11, %c0_12] : memref<1x112xf32, #tpu.memory_space<vmem>>, vector<1x112xf32>
    %17 = vector.broadcast %16 : vector<1x112xf32> to vector<14x112xf32>
    %18 = arith.addf %15, %17 : vector<14x112xf32>
    %cst_13 = arith.constant 0.000000e+00 : f32
    %19 = vector.broadcast %cst_13 : f32 to vector<14x112xf32>
    %20 = arith.maximumf %18, %19 : vector<14x112xf32>
    %21 = arith.truncf %20 : vector<14x112xf32> to vector<14x112xbf16>
    %22 = vector.extract_strided_slice %21 {offsets = [0, 0], sizes = [12, 112], strides = [1, 1]} : vector<14x112xbf16> to vector<12x112xbf16>
    %c0_14 = arith.constant 0 : index
    %c0_15 = arith.constant 0 : index
    %c0_16 = arith.constant 0 : index
    %23 = vector.load %arg4[%c0_14, %c0_15, %c0_16] : memref<3x112x96xbf16, #tpu.memory_space<vmem>>, vector<1x112x96xbf16>
    %24 = vector.shape_cast %23 : vector<1x112x96xbf16> to vector<112x96xbf16>
    %cst_17 = arith.constant dense<0.000000e+00> : vector<12x96xf32>
    %25 = tpu.matmul %22, %24, %cst_17 {dimension_numbers = #tpu.dot_dimension_numbers<[1], [0], [0], [1], [0, 0, 1, 1], [], []>} : vector<12x112xbf16>, vector<112x96xbf16>, vector<12x96xf32> -> vector<12x96xf32>
    %26 = vector.extract_strided_slice %21 {offsets = [1, 0], sizes = [12, 112], strides = [1, 1]} : vector<14x112xbf16> to vector<12x112xbf16>
    %c1_18 = arith.constant 1 : index
    %c0_19 = arith.constant 0 : index
    %c0_20 = arith.constant 0 : index
    %27 = vector.load %arg4[%c1_18, %c0_19, %c0_20] : memref<3x112x96xbf16, #tpu.memory_space<vmem>>, vector<1x112x96xbf16>
    %28 = vector.shape_cast %27 : vector<1x112x96xbf16> to vector<112x96xbf16>
    %cst_21 = arith.constant dense<0.000000e+00> : vector<12x96xf32>
    %29 = tpu.matmul %26, %28, %cst_21 {dimension_numbers = #tpu.dot_dimension_numbers<[1], [0], [0], [1], [0, 0, 1, 1], [], []>} : vector<12x112xbf16>, vector<112x96xbf16>, vector<12x96xf32> -> vector<12x96xf32>
    %30 = arith.addf %25, %29 : vector<12x96xf32>
    %31 = vector.extract_strided_slice %21 {offsets = [2, 0], sizes = [12, 112], strides = [1, 1]} : vector<14x112xbf16> to vector<12x112xbf16>
    %c2_22 = arith.constant 2 : index
    %c0_23 = arith.constant 0 : index
    %c0_24 = arith.constant 0 : index
    %32 = vector.load %arg4[%c2_22, %c0_23, %c0_24] : memref<3x112x96xbf16, #tpu.memory_space<vmem>>, vector<1x112x96xbf16>
    %33 = vector.shape_cast %32 : vector<1x112x96xbf16> to vector<112x96xbf16>
    %cst_25 = arith.constant dense<0.000000e+00> : vector<12x96xf32>
    %34 = tpu.matmul %31, %33, %cst_25 {dimension_numbers = #tpu.dot_dimension_numbers<[1], [0], [0], [1], [0, 0, 1, 1], [], []>} : vector<12x112xbf16>, vector<112x96xbf16>, vector<12x96xf32> -> vector<12x96xf32>
    %35 = arith.addf %30, %34 : vector<12x96xf32>
    %c0_26 = arith.constant 0 : index
    %c0_27 = arith.constant 0 : index
    %36 = vector.load %arg5[%c0_26, %c0_27] : memref<1x96xf32, #tpu.memory_space<vmem>>, vector<1x96xf32>
    %37 = vector.broadcast %36 : vector<1x96xf32> to vector<12x96xf32>
    %38 = arith.addf %35, %37 : vector<12x96xf32>
    %cst_28 = arith.constant 0.000000e+00 : f32
    %39 = vector.broadcast %cst_28 : f32 to vector<12x96xf32>
    %40 = arith.maximumf %38, %39 : vector<12x96xf32>
    %41 = arith.truncf %40 : vector<12x96xf32> to vector<12x96xbf16>
    %c0_29 = arith.constant 0 : index
    %c0_30 = arith.constant 0 : index
    %42 = vector.load %arg6[%c0_29, %c0_30] : memref<96x384xbf16, #tpu.memory_space<vmem>>, vector<96x384xbf16>
    %cst_31 = arith.constant dense<0.000000e+00> : vector<12x384xf32>
    %43 = tpu.matmul %41, %42, %cst_31 {dimension_numbers = #tpu.dot_dimension_numbers<[1], [0], [0], [1], [0, 0, 1, 1], [], []>} : vector<12x96xbf16>, vector<96x384xbf16>, vector<12x384xf32> -> vector<12x384xf32>
    %c0_32 = arith.constant 0 : index
    %c0_33 = arith.constant 0 : index
    %44 = vector.load %arg7[%c0_32, %c0_33] : memref<1x384xf32, #tpu.memory_space<vmem>>, vector<1x384xf32>
    %45 = vector.broadcast %44 : vector<1x384xf32> to vector<12x384xf32>
    %46 = arith.addf %43, %45 : vector<12x384xf32>
    %cst_34 = arith.constant 0.000000e+00 : f32
    %47 = vector.broadcast %cst_34 : f32 to vector<12x384xf32>
    %48 = arith.maximumf %46, %47 : vector<12x384xf32>
    %c0_35 = arith.constant 0 : index
    %c0_36 = arith.constant 0 : index
    %c0_37 = arith.constant 0 : index
    %49 = vector.load %arg8[%c0_35, %c0_36, %c0_37] : memref<1x12x384xf32, #tpu.memory_space<vmem>>, vector<1x12x384xf32>
    %50 = vector.shape_cast %49 : vector<1x12x384xf32> to vector<12x384xf32>
    %51 = vector.shape_cast %48 : vector<12x384xf32> to vector<1x12x384xf32>
    tpu.vector_store %arg8[%c0_35, %c0_36, %c0_37], %51 {strides = array<i32>} : memref<1x12x384xf32, #tpu.memory_space<vmem>>, vector<1x12x384xf32>,
    return
  }
  func.func @transform_0(%arg0: i32) -> (i32, i32, i32) {
    %c0_i32 = arith.constant 0 : i32
    %c0_i32_0 = arith.constant 0 : i32
    %c0_i32_1 = arith.constant 0 : i32
    return %arg0, %c0_i32, %c0_i32_0 : i32, i32, i32
  }
  func.func @transform_1(%arg0: i32) -> (i32, i32, i32) {
    %c0_i32 = arith.constant 0 : i32
    %c0_i32_0 = arith.constant 0 : i32
    %c0_i32_1 = arith.constant 0 : i32
    %c0_i32_2 = arith.constant 0 : i32
    return %c0_i32, %c0_i32_0, %c0_i32_1 : i32, i32, i32
  }
  func.func @transform_2(%arg0: i32) -> (i32, i32) {
    %c0_i32 = arith.constant 0 : i32
    %c0_i32_0 = arith.constant 0 : i32
    %c0_i32_1 = arith.constant 0 : i32
    return %c0_i32, %c0_i32_0 : i32, i32
  }
  func.func @transform_3(%arg0: i32) -> (i32, i32, i32) {
    %c0_i32 = arith.constant 0 : i32
    %c0_i32_0 = arith.constant 0 : i32
    %c0_i32_1 = arith.constant 0 : i32
    %c0_i32_2 = arith.constant 0 : i32
    return %c0_i32, %c0_i32_0, %c0_i32_1 : i32, i32, i32
  }
  func.func @transform_4(%arg0: i32) -> (i32, i32) {
    %c0_i32 = arith.constant 0 : i32
    %c0_i32_0 = arith.constant 0 : i32
    %c0_i32_1 = arith.constant 0 : i32
    return %c0_i32, %c0_i32_0 : i32, i32
  }
  func.func @transform_5(%arg0: i32) -> (i32, i32) {
    %c0_i32 = arith.constant 0 : i32
    %c0_i32_0 = arith.constant 0 : i32
    %c0_i32_1 = arith.constant 0 : i32
    return %c0_i32, %c0_i32_0 : i32, i32
  }
  func.func @transform_6(%arg0: i32) -> (i32, i32) {
    %c0_i32 = arith.constant 0 : i32
    %c0_i32_0 = arith.constant 0 : i32
    %c0_i32_1 = arith.constant 0 : i32
    return %c0_i32, %c0_i32_0 : i32, i32
  }
  func.func @transform_7(%arg0: i32) -> (i32, i32, i32) {
    %c0_i32 = arith.constant 0 : i32
    %c0_i32_0 = arith.constant 0 : i32
    %c0_i32_1 = arith.constant 0 : i32
    return %arg0, %c0_i32, %c0_i32_0 : i32, i32, i32
  }
}

</mosaic_0001>

<llo_original>
// kernel: tile.28
$region0: #{tile.28}
  #allocation0 [shape = 's32[1]{0}', space=sflag, size = 0x4, scoped, tag = 'scoped memory for tile.28']
  %s0 = inlined_call_operand.vmem [shape: f32[8], index: 0, kind: input, shape index: {}]
  %s1 = inlined_call_operand.vmem [shape: f32[48,8], index: 1, kind: output, shape index: {}]
  // Predicated region
  $region2: #{tile.28} parent=0 // pred_check
    _
  $region3: #{tile.28} parent=0 // pred_check_branch
    %3 = sbr.rel (0) target = $region5
  $region4: #{tile.28} parent=0 // pred_region
    _
  $region5: #{tile.28} parent=0 // pred_fallthru
    _
  %v4 = vld [vmem:[%s0] ss:$0 sm:$0xff]
  %5 = vst [vmem:[%s1] sm:$0xff] %v4
  %s6 = scalar_lea.vmem %s1, 8
  %7 = vst [vmem:[%s6] sm:$0xff] %v4
  %s8 = scalar_lea.vmem %s1, 16
  %9 = vst [vmem:[%s8] sm:$0xff] %v4
  %s10 = scalar_lea.vmem %s1, 24
  %11 = vst [vmem:[%s10] sm:$0xff] %v4
  %s12 = scalar_lea.vmem %s1, 32
  %13 = vst [vmem:[%s12] sm:$0xff] %v4
  %s14 = scalar_lea.vmem %s1, 40
  %15 = vst [vmem:[%s14] sm:$0xff] %v4

// kernel: tile.29
$region0: #{tile.29}
  %s0 = inlined_call_operand.vmem [shape: f32[48,8], index: 0, kind: input, shape index: {}]
  %s1 = inlined_call_operand.vmem [shape: f32[1,384], index: 1, kind: output, shape index: {}]
  $region1: #{tile.29} parent=0
    #allocation0 [shape = 'u8[12288]{0}', space=vmem, size = 0x3000, scoped, tag = 'scoped mem for output reshape']
    %s2 = smov 3
    %v3 = vld [vmem:[%s0] ss:$16 sm:%s2]
    %s4 = scalar_lea.vmem %s0, 30
    %v5 = vld [vmem:[%s4] sm:$0x4]
    %vm6 = vcmask 1042434
    %v7 = vsel %vm6, %v5, %v3
    %vm8 = vcmask 64512
    %9 = vst.msk [vmem:[#allocation0] ss:$8 sm:$0x7] %vm8, %v7
    %s10 = scalar_lea.vmem %s0, 15
    %s11 = smov 3
    %v12 = vld [vmem:[%s10] ss:$16 sm:%s11]
    %s13 = scalar_lea.vmem %s0, 45
    %v14 = vld [vmem:[%s13] sm:$0x4]
    %vm15 = vcmask 1042434
    %v16 = vsel %vm15, %v14, %v12
    %17 = vrot.lane.b32.xlu0 %v16, 120
    %v18 = vpop.permute.xlu0 %17
    %vm19 = vcmask 1048512
    %20 = vst.msk [vmem:[#allocation0] ss:$8 sm:$0x7] %vm19, %v18
    %s21 = scalar_lea.vmem %s0, 14
    %s22 = smov 3
    %v23 = vld [vmem:[%s21] ss:$16 sm:%s22]
    %s24 = scalar_lea.vmem %s0, 44
    %v25 = vld [vmem:[%s24] sm:$0x4]
    %vm26 = vcmask 1042434
    %v27 = vsel %vm26, %v25, %v23
    %28 = vrot.lane.b32.xlu0 %v27, 112
    %v29 = vpop.permute.xlu0 %28
    %vm30 = vcmask 982912
    %31 = vst.msk [vmem:[#allocation0] ss:$8 sm:$0x7] %vm30, %v29
    %s32 = scalar_lea.vmem %s0, 13
    %s33 = smov 3
    %v34 = vld [vmem:[%s32] ss:$16 sm:%s33]
    %s35 = scalar_lea.vmem %s0, 43
    %v36 = vld [vmem:[%s35] sm:$0x4]
    %vm37 = vcmask 1042434
    %v38 = vsel %vm37, %v36, %v34
    %39 = vrot.lane.b32.xlu0 %v38, 104
    %v40 = vpop.permute.xlu0 %39
    %vm41 = vcmask 917312
    %42 = vst.msk [vmem:[#allocation0] ss:$8 sm:$0x7] %vm41, %v40
    %s43 = scalar_lea.vmem %s0, 12
    %s44 = smov 3
    %v45 = vld [vmem:[%s43] ss:$16 sm:%s44]
    %s46 = scalar_lea.vmem %s0, 42
    %v47 = vld [vmem:[%s46] sm:$0x4]
    %vm48 = vcmask 1042434
    %v49 = vsel %vm48, %v47, %v45
    %50 = vrot.lane.b32.xlu0 %v49, 96
    %v51 = vpop.permute.xlu0 %50
    %vm52 = vcmask 851712
    %53 = vst.msk [vmem:[#allocation0] ss:$8 sm:$0x7] %vm52, %v51
    %s54 = scalar_lea.vmem %s0, 11
    %s55 = smov 3
    %v56 = vld [vmem:[%s54] ss:$16 sm:%s55]
    %s57 = scalar_lea.vmem %s0, 41
    %v58 = vld [vmem:[%s57] sm:$0x4]
    %vm59 = vcmask 1042434
    %v60 = vsel %vm59, %v58, %v56
    %61 = vrot.lane.b32.xlu0 %v60, 88
    %v62 = vpop.permute.xlu0 %61
    %vm63 = vcmask 786112
    %64 = vst.msk [vmem:[#allocation0] ss:$8 sm:$0x7] %vm63, %v62
    %s65 = scalar_lea.vmem %s0, 10
    %s66 = smov 3
    %v67 = vld [vmem:[%s65] ss:$16 sm:%s66]
    %s68 = scalar_lea.vmem %s0, 40
    %v69 = vld [vmem:[%s68] sm:$0x4]
    %vm70 = vcmask 1042434
    %v71 = vsel %vm70, %v69, %v67
    %72 = vrot.lane.b32.xlu0 %v71, 80
    %v73 = vpop.permute.xlu0 %72
    %vm74 = vcmask 720512
    %75 = vst.msk [vmem:[#allocation0] ss:$8 sm:$0x7] %vm74, %v73
    %s76 = scalar_lea.vmem %s0, 9
    %s77 = smov 3
    %v78 = vld [vmem:[%s76] ss:$16 sm:%s77]
    %s79 = scalar_lea.vmem %s0, 39
    %v80 = vld [vmem:[%s79] sm:$0x4]
    %vm81 = vcmask 1042434
    %v82 = vsel %vm81, %v80, %v78
    %83 = vrot.lane.b32.xlu0 %v82, 72
    %v84 = vpop.permute.xlu0 %83
    %vm85 = vcmask 654912
    %86 = vst.msk [vmem:[#allocation0] ss:$8 sm:$0x7] %vm85, %v84
    %s87 = scalar_lea.vmem %s0, 8
    %s88 = smov 3
    %v89 = vld [vmem:[%s87] ss:$16 sm:%s88]
    %s90 = scalar_lea.vmem %s0, 38
    %v91 = vld [vmem:[%s90] sm:$0x4]
    %vm92 = vcmask 1042434
    %v93 = vsel %vm92, %v91, %v89
    %94 = vrot.lane.b32.xlu0 %v93, 64
    %v95 = vpop.permute.xlu0 %94
    %vm96 = vcmask 589312
    %97 = vst.msk [vmem:[#allocation0] ss:$8 sm:$0x7] %vm96, %v95
    %s98 = scalar_lea.vmem %s0, 7
    %s99 = smov 3
    %v100 = vld [vmem:[%s98] ss:$16 sm:%s99]
    %s101 = scalar_lea.vmem %s0, 37
    %v102 = vld [vmem:[%s101] sm:$0x4]
    %vm103 = vcmask 1042434
    %v104 = vsel %vm103, %v102, %v100
    %105 = vrot.lane.b32.xlu0 %v104, 56
    %v106 = vpop.permute.xlu0 %105
    %vm107 = vcmask 523712
    %108 = vst.msk [vmem:[#allocation0] ss:$8 sm:$0x7] %vm107, %v106
    %s109 = scalar_lea.vmem %s0, 6
    %s110 = smov 3
    %v111 = vld [vmem:[%s109] ss:$16 sm:%s110]
    %s112 = scalar_lea.vmem %s0, 36
    %v113 = vld [vmem:[%s112] sm:$0x4]
    %vm114 = vcmask 1042434
    %v115 = vsel %vm114, %v113, %v111
    %116 = vrot.lane.b32.xlu0 %v115, 48
    %v117 = vpop.permute.xlu0 %116
    %vm118 = vcmask 458112
    %119 = vst.msk [vmem:[#allocation0] ss:$8 sm:$0x7] %vm118, %v117
    %s120 = scalar_lea.vmem %s0, 5
    %s121 = smov 3
    %v122 = vld [vmem:[%s120] ss:$16 sm:%s121]
    %s123 = scalar_lea.vmem %s0, 35
    %v124 = vld [vmem:[%s123] sm:$0x4]
    %vm125 = vcmask 1042434
    %v126 = vsel %vm125, %v124, %v122
    %127 = vrot.lane.b32.xlu0 %v126, 40
    %v128 = vpop.permute.xlu0 %127
    %vm129 = vcmask 392512
    %130 = vst.msk [vmem:[#allocation0] ss:$8 sm:$0x7] %vm129, %v128
    %s131 = scalar_lea.vmem %s0, 4
    %s132 = smov 3
    %v133 = vld [vmem:[%s131] ss:$16 sm:%s132]
    %s134 = scalar_lea.vmem %s0, 34
    %v135 = vld [vmem:[%s134] sm:$0x4]
    %vm136 = vcmask 1042434
    %v137 = vsel %vm136, %v135, %v133
    %138 = vrot.lane.b32.xlu0 %v137, 32
    %v139 = vpop.permute.xlu0 %138
    %vm140 = vcmask 326912
    %141 = vst.msk [vmem:[#allocation0] ss:$8 sm:$0x7] %vm140, %v139
    %s142 = scalar_lea.vmem %s0, 3
    %s143 = smov 3
    %v144 = vld [vmem:[%s142] ss:$16 sm:%s143]
    %s145 = scalar_lea.vmem %s0, 33
    %v146 = vld [vmem:[%s145] sm:$0x4]
    %vm147 = vcmask 1042434
    %v148 = vsel %vm147, %v146, %v144
    %149 = vrot.lane.b32.xlu0 %v148, 24
    %v150 = vpop.permute.xlu0 %149
    %vm151 = vcmask 261312
    %152 = vst.msk [vmem:[#allocation0] ss:$8 sm:$0x7] %vm151, %v150
    %s153 = scalar_lea.vmem %s0, 2
    %s154 = smov 3
    %v155 = vld [vmem:[%s153] ss:$16 sm:%s154]
    %s156 = scalar_lea.vmem %s0, 32
    %v157 = vld [vmem:[%s156] sm:$0x4]
    %vm158 = vcmask 1042434
    %v159 = vsel %vm158, %v157, %v155
    %160 = vrot.lane.b32.xlu0 %v159, 16
    %v161 = vpop.permute.xlu0 %160
    %vm162 = vcmask 195712
    %163 = vst.msk [vmem:[#allocation0] ss:$8 sm:$0x7] %vm162, %v161
    %s164 = scalar_lea.vmem %s0, 1
    %s165 = smov 3
    %v166 = vld [vmem:[%s164] ss:$16 sm:%s165]
    %s167 = scalar_lea.vmem %s0, 31
    %v168 = vld [vmem:[%s167] sm:$0x4]
    %vm169 = vcmask 1042434
    %v170 = vsel %vm169, %v168, %v166
    %171 = vrot.lane.b32.xlu0 %v170, 8
    %v172 = vpop.permute.xlu0 %171
    %vm173 = vcmask 130112
    %174 = vst.msk [vmem:[#allocation0] ss:$8 sm:$0x7] %vm173, %v172
    %s176 = ssub.s32 2, 1
    %v177 = vld [vmem:[#allocation0] sm:%s176]
    %s179 = ssub.s32 2, 1
    %180 = vst [vmem:[%s1] sm:%s179] %v177
    %s181 = scalar_lea.vmem [#allocation0], 8
    %v182 = vld [vmem:[%s181] sm:%s176]
    %s184 = ssub.s32 2, 1
    %s185 = scalar_lea.vmem %s1, 1
    %186 = vst [vmem:[%s185] sm:%s184] %v182
    %s187 = scalar_lea.vmem [#allocation0], 16
    %v188 = vld [vmem:[%s187] sm:%s176]
    %s190 = ssub.s32 2, 1
    %s191 = scalar_lea.vmem %s1, 2
    %192 = vst [vmem:[%s191] sm:%s190] %v188

// kernel: tile.18
$region0: #{tile.18}
  #allocation0 [shape = 's32[1]{0}', space=sflag, size = 0x4, scoped, tag = 'scoped memory for tile.18']
  %s0 = inlined_call_operand.vmem [shape: f32[8], index: 0, kind: input, shape index: {}]
  %s1 = inlined_call_operand.vmem [shape: f32[14,8], index: 1, kind: output, shape index: {}]
  // Predicated region
  $region2: #{tile.18} parent=0 // pred_check
    _
  $region3: #{tile.18} parent=0 // pred_check_branch
    %3 = sbr.rel (0) target = $region5
  $region4: #{tile.18} parent=0 // pred_region
    _
  $region5: #{tile.18} parent=0 // pred_fallthru
    _
  %v4 = vld [vmem:[%s0] ss:$0 sm:$0xff]
  %5 = vst [vmem:[%s1] sm:$0xff] %v4
  %s6 = scalar_lea.vmem %s1, 8
  %7 = vst [vmem:[%s6] sm:$0xff] %v4

// kernel: tile.19
$region0: #{tile.19}
  %s0 = inlined_call_operand.vmem [shape: f32[14,8], index: 0, kind: input, shape index: {}]
  %s1 = inlined_call_operand.vmem [shape: f32[1,112], index: 1, kind: output, shape index: {}]
  $region1: #{tile.19} parent=0
    #allocation0 [shape = 'u8[4096]{0}', space=vmem, size = 0x1000, scoped, tag = 'scoped mem for output reshape']
    %v2 = vld [vmem:[%s0] sm:$0x1]
    %vm3 = vcmask 64512
    %4 = vst.msk [vmem:[#allocation0] sm:$0x1] %vm3, %v2
    %s5 = scalar_lea.vmem %s0, 13
    %v6 = vld [vmem:[%s5] sm:$0x1]
    %7 = vrot.lane.b32.xlu0 %v6, 104
    %v8 = vpop.permute.xlu0 %7
    %vm9 = vcmask 917312
    %10 = vst.msk [vmem:[#allocation0] sm:$0x1] %vm9, %v8
    %s11 = scalar_lea.vmem %s0, 12
    %v12 = vld [vmem:[%s11] sm:$0x1]
    %13 = vrot.lane.b32.xlu0 %v12, 96
    %v14 = vpop.permute.xlu0 %13
    %vm15 = vcmask 851712
    %16 = vst.msk [vmem:[#allocation0] sm:$0x1] %vm15, %v14
    %s17 = scalar_lea.vmem %s0, 11
    %v18 = vld [vmem:[%s17] sm:$0x1]
    %19 = vrot.lane.b32.xlu0 %v18, 88
    %v20 = vpop.permute.xlu0 %19
    %vm21 = vcmask 786112
    %22 = vst.msk [vmem:[#allocation0] sm:$0x1] %vm21, %v20
    %s23 = scalar_lea.vmem %s0, 10
    %v24 = vld [vmem:[%s23] sm:$0x1]
    %25 = vrot.lane.b32.xlu0 %v24, 80
    %v26 = vpop.permute.xlu0 %25
    %vm27 = vcmask 720512
    %28 = vst.msk [vmem:[#allocation0] sm:$0x1] %vm27, %v26
    %s29 = scalar_lea.vmem %s0, 9
    %v30 = vld [vmem:[%s29] sm:$0x1]
    %31 = vrot.lane.b32.xlu0 %v30, 72
    %v32 = vpop.permute.xlu0 %31
    %vm33 = vcmask 654912
    %34 = vst.msk [vmem:[#allocation0] sm:$0x1] %vm33, %v32
    %s35 = scalar_lea.vmem %s0, 8
    %v36 = vld [vmem:[%s35] sm:$0x1]
    %37 = vrot.lane.b32.xlu0 %v36, 64
    %v38 = vpop.permute.xlu0 %37
    %vm39 = vcmask 589312
    %40 = vst.msk [vmem:[#allocation0] sm:$0x1] %vm39, %v38
    %s41 = scalar_lea.vmem %s0, 7
    %v42 = vld [vmem:[%s41] sm:$0x1]
    %43 = vrot.lane.b32.xlu0 %v42, 56
    %v44 = vpop.permute.xlu0 %43
    %vm45 = vcmask 523712
    %46 = vst.msk [vmem:[#allocation0] sm:$0x1] %vm45, %v44
    %s47 = scalar_lea.vmem %s0, 6
    %v48 = vld [vmem:[%s47] sm:$0x1]
    %49 = vrot.lane.b32.xlu0 %v48, 48
    %v50 = vpop.permute.xlu0 %49
    %vm51 = vcmask 458112
    %52 = vst.msk [vmem:[#allocation0] sm:$0x1] %vm51, %v50
    %s53 = scalar_lea.vmem %s0, 5
    %v54 = vld [vmem:[%s53] sm:$0x1]
    %55 = vrot.lane.b32.xlu0 %v54, 40
    %v56 = vpop.permute.xlu0 %55
    %vm57 = vcmask 392512
    %58 = vst.msk [vmem:[#allocation0] sm:$0x1] %vm57, %v56
    %s59 = scalar_lea.vmem %s0, 4
    %v60 = vld [vmem:[%s59] sm:$0x1]
    %61 = vrot.lane.b32.xlu0 %v60, 32
    %v62 = vpop.permute.xlu0 %61
    %vm63 = vcmask 326912
    %64 = vst.msk [vmem:[#allocation0] sm:$0x1] %vm63, %v62
    %s65 = scalar_lea.vmem %s0, 3
    %v66 = vld [vmem:[%s65] sm:$0x1]
    %67 = vrot.lane.b32.xlu0 %v66, 24
    %v68 = vpop.permute.xlu0 %67
    %vm69 = vcmask 261312
    %70 = vst.msk [vmem:[#allocation0] sm:$0x1] %vm69, %v68
    %s71 = scalar_lea.vmem %s0, 2
    %v72 = vld [vmem:[%s71] sm:$0x1]
    %73 = vrot.lane.b32.xlu0 %v72, 16
    %v74 = vpop.permute.xlu0 %73
    %vm75 = vcmask 195712
    %76 = vst.msk [vmem:[#allocation0] sm:$0x1] %vm75, %v74
    %s77 = scalar_lea.vmem %s0, 1
    %v78 = vld [vmem:[%s77] sm:$0x1]
    %79 = vrot.lane.b32.xlu0 %v78, 8
    %v80 = vpop.permute.xlu0 %79
    %vm81 = vcmask 130112
    %82 = vst.msk [vmem:[#allocation0] sm:$0x1] %vm81, %v80
    %s84 = ssub.s32 2, 1
    %v85 = vld [vmem:[#allocation0] sm:%s84]
    %s87 = ssub.s32 2, 1
    %88 = vst [vmem:[%s1] sm:%s87] %v85

// kernel: tile.23
$region0: #{tile.23}
  #allocation0 [shape = 's32[1]{0}', space=sflag, size = 0x4, scoped, tag = 'scoped memory for tile.23']
  %s0 = inlined_call_operand.vmem [shape: f32[8], index: 0, kind: input, shape index: {}]
  %s1 = inlined_call_operand.vmem [shape: f32[12,8], index: 1, kind: output, shape index: {}]
  // Predicated region
  $region2: #{tile.23} parent=0 // pred_check
    _
  $region3: #{tile.23} parent=0 // pred_check_branch
    %3 = sbr.rel (0) target = $region5
  $region4: #{tile.23} parent=0 // pred_region
    _
  $region5: #{tile.23} parent=0 // pred_fallthru
    _
  %v4 = vld [vmem:[%s0] ss:$0 sm:$0xff]
  %5 = vst [vmem:[%s1] sm:$0xff] %v4
  %s6 = scalar_lea.vmem %s1, 8
  %7 = vst [vmem:[%s6] sm:$0xff] %v4

// kernel: tile.24
$region0: #{tile.24}
  %s0 = inlined_call_operand.vmem [shape: f32[12,8], index: 0, kind: input, shape index: {}]
  %s1 = inlined_call_operand.vmem [shape: f32[1,96], index: 1, kind: output, shape index: {}]
  $region1: #{tile.24} parent=0
    #allocation0 [shape = 'u8[4096]{0}', space=vmem, size = 0x1000, scoped, tag = 'scoped mem for output reshape']
    %v2 = vld [vmem:[%s0] sm:$0x1]
    %vm3 = vcmask 64512
    %4 = vst.msk [vmem:[#allocation0] sm:$0x1] %vm3, %v2
    %s5 = scalar_lea.vmem %s0, 11
    %v6 = vld [vmem:[%s5] sm:$0x1]
    %7 = vrot.lane.b32.xlu0 %v6, 88
    %v8 = vpop.permute.xlu0 %7
    %vm9 = vcmask 786112
    %10 = vst.msk [vmem:[#allocation0] sm:$0x1] %vm9, %v8
    %s11 = scalar_lea.vmem %s0, 10
    %v12 = vld [vmem:[%s11] sm:$0x1]
    %13 = vrot.lane.b32.xlu0 %v12, 80
    %v14 = vpop.permute.xlu0 %13
    %vm15 = vcmask 720512
    %16 = vst.msk [vmem:[#allocation0] sm:$0x1] %vm15, %v14
    %s17 = scalar_lea.vmem %s0, 9
    %v18 = vld [vmem:[%s17] sm:$0x1]
    %19 = vrot.lane.b32.xlu0 %v18, 72
    %v20 = vpop.permute.xlu0 %19
    %vm21 = vcmask 654912
    %22 = vst.msk [vmem:[#allocation0] sm:$0x1] %vm21, %v20
    %s23 = scalar_lea.vmem %s0, 8
    %v24 = vld [vmem:[%s23] sm:$0x1]
    %25 = vrot.lane.b32.xlu0 %v24, 64
    %v26 = vpop.permute.xlu0 %25
    %vm27 = vcmask 589312
    %28 = vst.msk [vmem:[#allocation0] sm:$0x1] %vm27, %v26
    %s29 = scalar_lea.vmem %s0, 7
    %v30 = vld [vmem:[%s29] sm:$0x1]
    %31 = vrot.lane.b32.xlu0 %v30, 56
    %v32 = vpop.permute.xlu0 %31
    %vm33 = vcmask 523712
    %34 = vst.msk [vmem:[#allocation0] sm:$0x1] %vm33, %v32
    %s35 = scalar_lea.vmem %s0, 6
    %v36 = vld [vmem:[%s35] sm:$0x1]
    %37 = vrot.lane.b32.xlu0 %v36, 48
    %v38 = vpop.permute.xlu0 %37
    %vm39 = vcmask 458112
    %40 = vst.msk [vmem:[#allocation0] sm:$0x1] %vm39, %v38
    %s41 = scalar_lea.vmem %s0, 5
    %v42 = vld [vmem:[%s41] sm:$0x1]
    %43 = vrot.lane.b32.xlu0 %v42, 40
    %v44 = vpop.permute.xlu0 %43
    %vm45 = vcmask 392512
    %46 = vst.msk [vmem:[#allocation0] sm:$0x1] %vm45, %v44
    %s47 = scalar_lea.vmem %s0, 4
    %v48 = vld [vmem:[%s47] sm:$0x1]
    %49 = vrot.lane.b32.xlu0 %v48, 32
    %v50 = vpop.permute.xlu0 %49
    %vm51 = vcmask 326912
    %52 = vst.msk [vmem:[#allocation0] sm:$0x1] %vm51, %v50
    %s53 = scalar_lea.vmem %s0, 3
    %v54 = vld [vmem:[%s53] sm:$0x1]
    %55 = vrot.lane.b32.xlu0 %v54, 24
    %v56 = vpop.permute.xlu0 %55
    %vm57 = vcmask 261312
    %58 = vst.msk [vmem:[#allocation0] sm:$0x1] %vm57, %v56
    %s59 = scalar_lea.vmem %s0, 2
    %v60 = vld [vmem:[%s59] sm:$0x1]
    %61 = vrot.lane.b32.xlu0 %v60, 16
    %v62 = vpop.permute.xlu0 %61
    %vm63 = vcmask 195712
    %64 = vst.msk [vmem:[#allocation0] sm:$0x1] %vm63, %v62
    %s65 = scalar_lea.vmem %s0, 1
    %v66 = vld [vmem:[%s65] sm:$0x1]
    %67 = vrot.lane.b32.xlu0 %v66, 8
    %v68 = vpop.permute.xlu0 %67
    %vm69 = vcmask 130112
    %70 = vst.msk [vmem:[#allocation0] sm:$0x1] %vm69, %v68
    %s72 = ssub.s32 2, 1
    %v73 = vld [vmem:[#allocation0] sm:%s72]
    %s75 = ssub.s32 2, 1
    %76 = vst [vmem:[%s1] sm:%s75] %v73

// kernel: expansive_unit1_forward.1
$region0: #{expansive_unit1_forward.1}
  #allocation0 [shape = 'u32[]', space=smem, size = 0x4, offset = 0x4, fixed_abs, tag = 'smem constant byte address 0x4 - core index']
  #allocation1 [shape = 'u32[72,128]{1,0:T(1,128)}', space=vmem, size = 0x9000, scoped, tag = 'internal scratch']
  %s0 = inlined_call_operand.vmem [shape: bf16[2,16,64], index: 0, kind: input, shape index: {}]
  %s1 = inlined_call_operand.vmem [shape: bf16[3,64,112], index: 1, kind: input, shape index: {}]
  %s2 = inlined_call_operand.vmem [shape: f32[1,112], index: 2, kind: input, shape index: {}]
  %s3 = inlined_call_operand.vmem [shape: bf16[3,112,96], index: 3, kind: input, shape index: {}]
  %s4 = inlined_call_operand.vmem [shape: f32[1,96], index: 4, kind: input, shape index: {}]
  %s5 = inlined_call_operand.vmem [shape: bf16[96,384], index: 5, kind: input, shape index: {}]
  %s6 = inlined_call_operand.vmem [shape: f32[1,384], index: 6, kind: input, shape index: {}]
  %s7 = inlined_call_operand.vmem [shape: f32[2,12,384], index: 7, kind: output, shape index: {}]
  %s8 = sld [smem:[#allocation0]]
  $region61: #{expansive_unit1_forward.1} parent=0
    _
  %s10 = ssub.s32 1, %s8
  %s11 = scalar_select 0, %s10, %s8
  loop: start=0, step=1, limit=4
  $region2: #{expansive_unit1_forward.1} parent=0 // loop_pre_header
    _
  $region3: #{expansive_unit1_forward.1} parent=0 // loop_header
    %s13 = sphi 0, %s17
    %p14 = scmp.ge.s32.totalorder %s13, 4
    %s23 = sphi 0, %s25
    %s26 = sphi 0, %s23
    %s27 = sphi 0, %s26
    %s43 = sphi 0, %s27
    %s47 = sphi 0, %s47
    %s49 = sphi 0, %s47
    %s50 = sphi 0, %s49
    %s64 = sphi 0, %s50
    %s68 = sphi 0, %s68
    %s70 = sphi 0, %s68
    %s71 = sphi 0, %s70
    %s85 = sphi 0, %s71
    %s89 = sphi 0, %s89
    %s91 = sphi 0, %s89
    %s92 = sphi 0, %s91
    %s106 = sphi 0, %s92
    %s110 = sphi 0, %s110
    %s112 = sphi 0, %s110
    %s113 = sphi 0, %s112
    %s127 = sphi 0, %s113
    %s131 = sphi 0, %s131
    %s133 = sphi 0, %s131
    %s134 = sphi 0, %s133
    %s148 = sphi 0, %s134
    %s152 = sphi 0, %s152
    %s154 = sphi 0, %s152
    %s155 = sphi 0, %s154
    %s169 = sphi 0, %s155
    %s175 = sphi 0, %s177
    %s178 = sphi 0, %s175
    %s179 = sphi 0, %s178
    %s195 = sphi 0, %s179
  $region4: #{expansive_unit1_forward.1} parent=0 // loop_header_branch
    %16 = sbr.rel (%p14) target = $region8
  $region5: #{expansive_unit1_forward.1} parent=0 // loop_body
    %s18 = ssub.s32 %s13, 1
    %s19 = ssub.s32 %s13, 2
    %s20 = sadd.s32 %s13, 1
    %s21 = ssub.s32 %s13, %s20
    %p22 = scmp.eq.s32.totalorder %s21, 0
    %s24 = sadd.s32 %s23, 1
    %s25 = scalar_select %p22, %s23, %s24
    %p28 = pneg %p22
    %p29 = scmp.eq.s32.totalorder %s13, 1
    %p30 = por %p28, %p29
    %p31 = scmp.ne.s32.totalorder %s23, %s26
    %p32 = scmp.eq.s32.totalorder %s13, 0
    %p33 = por %p31, %p32
    %p34 = scmp.ne.s32.totalorder %s23, %s26
    %p35 = scmp.eq.s32.totalorder %s18, 1
    %p36 = por %p34, %p35
    %p37 = scmp.ne.s32.totalorder %s26, %s27
    %p38 = scmp.eq.s32.totalorder %s18, 0
    %p39 = por %p37, %p38
    %p40 = scmp.ne.s32.totalorder %s26, %s27
    %p41 = scmp.eq.s32.totalorder %s19, 1
    %p42 = por %p40, %p41
    %p44 = scmp.ne.s32.totalorder %s27, %s43
    %p45 = scmp.eq.s32.totalorder %s19, 0
    %p46 = por %p44, %p45
    %s48 = sadd.s32 %s47, 1
    %p51 = scmp.eq.s32.totalorder %s13, 1
    %p52 = scmp.ne.s32.totalorder %s47, %s49
    %p53 = scmp.eq.s32.totalorder %s13, 0
    %p54 = por %p52, %p53
    %p55 = scmp.ne.s32.totalorder %s47, %s49
    %p56 = scmp.eq.s32.totalorder %s18, 1
    %p57 = por %p55, %p56
    %p58 = scmp.ne.s32.totalorder %s49, %s50
    %p59 = scmp.eq.s32.totalorder %s18, 0
    %p60 = por %p58, %p59
    %p61 = scmp.ne.s32.totalorder %s49, %s50
    %p62 = scmp.eq.s32.totalorder %s19, 1
    %p63 = por %p61, %p62
    %p65 = scmp.ne.s32.totalorder %s50, %s64
    %p66 = scmp.eq.s32.totalorder %s19, 0
    %p67 = por %p65, %p66
    %s69 = sadd.s32 %s68, 1
    %p72 = scmp.eq.s32.totalorder %s13, 1
    %p73 = scmp.ne.s32.totalorder %s68, %s70
    %p74 = scmp.eq.s32.totalorder %s13, 0
    %p75 = por %p73, %p74
    %p76 = scmp.ne.s32.totalorder %s68, %s70
    %p77 = scmp.eq.s32.totalorder %s18, 1
    %p78 = por %p76, %p77
    %p79 = scmp.ne.s32.totalorder %s70, %s71
    %p80 = scmp.eq.s32.totalorder %s18, 0
    %p81 = por %p79, %p80
    %p82 = scmp.ne.s32.totalorder %s70, %s71
    %p83 = scmp.eq.s32.totalorder %s19, 1
    %p84 = por %p82, %p83
    %p86 = scmp.ne.s32.totalorder %s71, %s85
    %p87 = scmp.eq.s32.totalorder %s19, 0
    %p88 = por %p86, %p87
    %s90 = sadd.s32 %s89, 1
    %p93 = scmp.eq.s32.totalorder %s13, 1
    %p94 = scmp.ne.s32.totalorder %s89, %s91
    %p95 = scmp.eq.s32.totalorder %s13, 0
    %p96 = por %p94, %p95
    %p97 = scmp.ne.s32.totalorder %s89, %s91
    %p98 = scmp.eq.s32.totalorder %s18, 1
    %p99 = por %p97, %p98
    %p100 = scmp.ne.s32.totalorder %s91, %s92
    %p101 = scmp.eq.s32.totalorder %s18, 0
    %p102 = por %p100, %p101
    %p103 = scmp.ne.s32.totalorder %s91, %s92
    %p104 = scmp.eq.s32.totalorder %s19, 1
    %p105 = por %p103, %p104
    %p107 = scmp.ne.s32.totalorder %s92, %s106
    %p108 = scmp.eq.s32.totalorder %s19, 0
    %p109 = por %p107, %p108
    %s111 = sadd.s32 %s110, 1
    %p114 = scmp.eq.s32.totalorder %s13, 1
    %p115 = scmp.ne.s32.totalorder %s110, %s112
    %p116 = scmp.eq.s32.totalorder %s13, 0
    %p117 = por %p115, %p116
    %p118 = scmp.ne.s32.totalorder %s110, %s112
    %p119 = scmp.eq.s32.totalorder %s18, 1
    %p120 = por %p118, %p119
    %p121 = scmp.ne.s32.totalorder %s112, %s113
    %p122 = scmp.eq.s32.totalorder %s18, 0
    %p123 = por %p121, %p122
    %p124 = scmp.ne.s32.totalorder %s112, %s113
    %p125 = scmp.eq.s32.totalorder %s19, 1
    %p126 = por %p124, %p125
    %p128 = scmp.ne.s32.totalorder %s113, %s127
    %p129 = scmp.eq.s32.totalorder %s19, 0
    %p130 = por %p128, %p129
    %s132 = sadd.s32 %s131, 1
    %p135 = scmp.eq.s32.totalorder %s13, 1
    %p136 = scmp.ne.s32.totalorder %s131, %s133
    %p137 = scmp.eq.s32.totalorder %s13, 0
    %p138 = por %p136, %p137
    %p139 = scmp.ne.s32.totalorder %s131, %s133
    %p140 = scmp.eq.s32.totalorder %s18, 1
    %p141 = por %p139, %p140
    %p142 = scmp.ne.s32.totalorder %s133, %s134
    %p143 = scmp.eq.s32.totalorder %s18, 0
    %p144 = por %p142, %p143
    %p145 = scmp.ne.s32.totalorder %s133, %s134
    %p146 = scmp.eq.s32.totalorder %s19, 1
    %p147 = por %p145, %p146
    %p149 = scmp.ne.s32.totalorder %s134, %s148
    %p150 = scmp.eq.s32.totalorder %s19, 0
    %p151 = por %p149, %p150
    %s153 = sadd.s32 %s152, 1
    %p156 = scmp.eq.s32.totalorder %s13, 1
    %p157 = scmp.ne.s32.totalorder %s152, %s154
    %p158 = scmp.eq.s32.totalorder %s13, 0
    %p159 = por %p157, %p158
    %p160 = scmp.ne.s32.totalorder %s152, %s154
    %p161 = scmp.eq.s32.totalorder %s18, 1
    %p162 = por %p160, %p161
    %p163 = scmp.ne.s32.totalorder %s154, %s155
    %p164 = scmp.eq.s32.totalorder %s18, 0
    %p165 = por %p163, %p164
    %p166 = scmp.ne.s32.totalorder %s154, %s155
    %p167 = scmp.eq.s32.totalorder %s19, 1
    %p168 = por %p166, %p167
    %p170 = scmp.ne.s32.totalorder %s155, %s169
    %p171 = scmp.eq.s32.totalorder %s19, 0
    %p172 = por %p170, %p171
    %s173 = ssub.s32 %s13, %s20
    %p174 = scmp.eq.s32.totalorder %s173, 0
    %s176 = sadd.s32 %s175, 1
    %s177 = scalar_select %p174, %s175, %s176
    %p180 = pneg %p174
    %p181 = scmp.eq.s32.totalorder %s13, 1
    %p182 = por %p180, %p181
    %p183 = scmp.ne.s32.totalorder %s175, %s178
    %p184 = scmp.eq.s32.totalorder %s13, 0
    %p185 = por %p183, %p184
    %p186 = scmp.ne.s32.totalorder %s175, %s178
    %p187 = scmp.eq.s32.totalorder %s18, 1
    %p188 = por %p186, %p187
    %p189 = scmp.ne.s32.totalorder %s178, %s179
    %p190 = scmp.eq.s32.totalorder %s18, 0
    %p191 = por %p189, %p190
    %p192 = scmp.ne.s32.totalorder %s178, %s179
    %p193 = scmp.eq.s32.totalorder %s19, 1
    %p194 = por %p192, %p193
    %p196 = scmp.ne.s32.totalorder %s179, %s195
    %p197 = scmp.eq.s32.totalorder %s19, 0
    %p198 = por %p196, %p197
    %p199 = scmp.le.s32.totalorder 1, %s13
    %p200 = scmp.lt.s32.totalorder %s13, 3
    %p201 = pnand %p199, %p200
    %p202 = pneg %p201
    // Predicated region
    $region9: #{expansive_unit1_forward.1} parent=5 // pred_check
      _
    $region10: #{expansive_unit1_forward.1} parent=5 // pred_check_branch
      %204 = sbr.rel (%p201) target = $region12
    $region11: #{expansive_unit1_forward.1} parent=5 // pred_region
      %s205 = ssub.s32 %s13, 1
      // Predicated region
      $region13: #{expansive_unit1_forward.1} parent=11 // pred_check
        %p206 = pneg %p60
      $region14: #{expansive_unit1_forward.1} parent=11 // pred_check_branch
        %208 = sbr.rel (%p206) target = $region16
      $region15: #{expansive_unit1_forward.1} parent=11 // pred_region
        _
      $region16: #{expansive_unit1_forward.1} parent=11 // pred_fallthru
        _
      // Predicated region
      $region17: #{expansive_unit1_forward.1} parent=11 // pred_check
        %p209 = pneg %p81
      $region18: #{expansive_unit1_forward.1} parent=11 // pred_check_branch
        %211 = sbr.rel (%p209) target = $region20
      $region19: #{expansive_unit1_forward.1} parent=11 // pred_region
        _
      $region20: #{expansive_unit1_forward.1} parent=11 // pred_fallthru
        _
      // Predicated region
      $region21: #{expansive_unit1_forward.1} parent=11 // pred_check
        %p212 = pneg %p102
      $region22: #{expansive_unit1_forward.1} parent=11 // pred_check_branch
        %214 = sbr.rel (%p212) target = $region24
      $region23: #{expansive_unit1_forward.1} parent=11 // pred_region
        _
      $region24: #{expansive_unit1_forward.1} parent=11 // pred_fallthru
        _
      // Predicated region
      $region25: #{expansive_unit1_forward.1} parent=11 // pred_check
        %p215 = pneg %p123
      $region26: #{expansive_unit1_forward.1} parent=11 // pred_check_branch
        %217 = sbr.rel (%p215) target = $region28
      $region27: #{expansive_unit1_forward.1} parent=11 // pred_region
        _
      $region28: #{expansive_unit1_forward.1} parent=11 // pred_fallthru
        _
      // Predicated region
      $region29: #{expansive_unit1_forward.1} parent=11 // pred_check
        %p218 = pneg %p144
      $region30: #{expansive_unit1_forward.1} parent=11 // pred_check_branch
        %220 = sbr.rel (%p218) target = $region32
      $region31: #{expansive_unit1_forward.1} parent=11 // pred_region
        _
      $region32: #{expansive_unit1_forward.1} parent=11 // pred_fallthru
        _
      // Predicated region
      $region33: #{expansive_unit1_forward.1} parent=11 // pred_check
        %p221 = pneg %p165
      $region34: #{expansive_unit1_forward.1} parent=11 // pred_check_branch
        %223 = sbr.rel (%p221) target = $region36
      $region35: #{expansive_unit1_forward.1} parent=11 // pred_region
        _
      $region36: #{expansive_unit1_forward.1} parent=11 // pred_fallthru
        _
    $region12: #{expansive_unit1_forward.1} parent=5 // pred_fallthru
      _
    %p224 = scmp.lt.s32.totalorder %s13, 2
    // Predicated region
    $region37: #{expansive_unit1_forward.1} parent=5 // pred_check
      %p225 = pneg %p224
    $region38: #{expansive_unit1_forward.1} parent=5 // pred_check_branch
      %227 = sbr.rel (%p225) target = $region40
    $region39: #{expansive_unit1_forward.1} parent=5 // pred_region
      // Predicated region
      $region41: #{expansive_unit1_forward.1} parent=39 // pred_check
        %p228 = pneg %p33
      $region42: #{expansive_unit1_forward.1} parent=39 // pred_check_branch
        %230 = sbr.rel (%p228) target = $region44
      $region43: #{expansive_unit1_forward.1} parent=39 // pred_region
        %p231 = scmp.lt.s32.totalorder %s13, 1
        %s232 = scalar_select %p231, %s13, 1
        %s233 = smul.addr %s232, 2
        %s234 = smul.addr %s233, 4
        %s235 = scalar_lea.vmem %s0, %s234
      $region44: #{expansive_unit1_forward.1} parent=39 // pred_fallthru
        _
    $region40: #{expansive_unit1_forward.1} parent=5 // pred_fallthru
      _
    %p236 = scmp.le.s32.totalorder 1, %s13
    %p237 = scmp.lt.s32.totalorder %s13, 3
    %p238 = pnand %p236, %p237
    %p239 = pneg %p238
    // Predicated region
    $region45: #{expansive_unit1_forward.1} parent=5 // pred_check
      _
    $region46: #{expansive_unit1_forward.1} parent=5 // pred_check_branch
      %241 = sbr.rel (%p238) target = $region48
    $region47: #{expansive_unit1_forward.1} parent=5 // pred_region
      %s242 = ssub.s32 %s13, 1
      %p243 = scmp.lt.s32.totalorder %s18, 1
      %s244 = scalar_select %p243, %s18, 1
      %s245 = smul.addr %s244, 2
      %s246 = smul.addr %s245, 4
      %s247 = scalar_lea.vmem %s0, %s246
      %p248 = pneg %p39
      %p249 = pneg %p36
      %p250 = pneg %p60
      %p251 = pneg %p57
      %p252 = pneg %p81
      %p253 = pneg %p78
      %p254 = pneg %p102
      %p255 = pneg %p99
      %p256 = pneg %p123
      %p257 = pneg %p120
      %p258 = pneg %p144
      %p259 = pneg %p141
      %p260 = pneg %p165
      %p261 = pneg %p162
      %p262 = pneg %p191
      %p263 = pneg %p188
      %p264 = scmp.lt.s32.totalorder %s18, 1
      %s265 = scalar_select %p264, %s18, 1
      %s266 = smul.addr %s265, 6
      %s267 = smul.addr %s266, 8
      %s268 = scalar_lea.vmem %s7, %s267
      %p269 = scmp.lt.s32.totalorder %s18, 1
      %s270 = scalar_select %p269, %s18, 1
      %s271 = smul.addr %s270, 2
      %s272 = smul.addr %s271, 4
      %s273 = scalar_lea.vmem %s0, %s272
      %p274 = scmp.lt.s32.totalorder %s18, 1
      %s275 = scalar_select %p274, %s18, 1
      %s276 = smul.addr %s275, 6
      %s277 = smul.addr %s276, 8
      %s278 = scalar_lea.vmem %s7, %s277
      %v280 = vld [vmem:[%s273] sm:$0xf]
      %v281 = vld [vmem:[%s273 + $0x4] sm:$0xf]
      %v282 = vld [vmem:[%s1] sm:$0xf]
      %v283 = vld [vmem:[%s1 + $0x4] sm:$0xf]
      %v284 = vld [vmem:[%s1 + $0x8] sm:$0xf]
      %v285 = vld [vmem:[%s1 + $0xc] sm:$0xf]
      %v286 = vld [vmem:[%s1 + $0x10] sm:$0xf]
      %v287 = vld [vmem:[%s1 + $0x14] sm:$0xf]
      %v288 = vld [vmem:[%s1 + $0x18] sm:$0xf]
      %v289 = vld [vmem:[%s1 + $0x1c] sm:$0xf]
      %s290 = scalar_lea.vmem %s1, 32
      %v291 = vld [vmem:[%s290] sm:$0xf]
      %v292 = vld [vmem:[%s290 + $0x4] sm:$0xf]
      %v293 = vld [vmem:[%s290 + $0x8] sm:$0xf]
      %v294 = vld [vmem:[%s290 + $0xc] sm:$0xf]
      %v295 = vld [vmem:[%s290 + $0x10] sm:$0xf]
      %v296 = vld [vmem:[%s290 + $0x14] sm:$0xf]
      %v297 = vld [vmem:[%s290 + $0x18] sm:$0xf]
      %v298 = vld [vmem:[%s290 + $0x1c] sm:$0xf]
      %v301 = vunpack.c.l.b16 %v280
      %v302 = vunpack.c.l.b16 %v281
      %v303 = vpack.c.b16 %v302, %v301
      %v305 = vshrl.u32 %v303, 16
      %v307 = vshll.u32 %v303, 16
      %v309 = vrot.slane %v307, 1
      %v310 = vor.u32 %v305, %v309
      %v319 = vunpack.c.l.b16 %v291
      %v320 = vunpack.c.l.b16 %v292
      %v321 = vunpack.c.l.b16 %v293
      %v322 = vunpack.c.l.b16 %v294
      %v323 = vunpack.c.l.b16 %v295
      %v324 = vunpack.c.l.b16 %v296
      %v325 = vunpack.c.l.b16 %v297
      %v326 = vunpack.c.l.b16 %v298
      %v327 = vpack.c.b16 %v320, %v319
      %v328 = vpack.c.b16 %v322, %v321
      %v329 = vpack.c.b16 %v324, %v323
      %v330 = vpack.c.b16 %v326, %v325
      %vm335 = vcmask 523264
      %v337 = vsel %vm335, %v310, 0
      %339 = vmatpush.bf16.msra.mxu0 0
      %340 = vmatpush.bf16.msra.mxu0 0
      %341 = vmatpush.bf16.msra.mxu0 0
      %342 = vmatpush.bf16.msra.mxu0 0
      %343 = vmatpush.bf16.msra.mxu0 %v330
      %344 = vmatpush.bf16.msra.mxu0 %v329
      %345 = vmatpush.bf16.msra.mxu0 %v328
      %346 = vmatpush.bf16.msra.mxu0 %v327
      %347 = vmatmul.bf16.gmra.mxu0 %v337
      %v348 = vpop.f32.mrf.mxu0
      %v349 = vadd.f32 0.0, %v348
      %v350 = vpop.f32.mrf.mxu0
      %v351 = vadd.f32 0.0, %v350
      %352 = vdwg.mxu0
      %v361 = vunpack.c.l.b16 %v282
      %v362 = vunpack.c.l.b16 %v283
      %v363 = vunpack.c.l.b16 %v284
      %v364 = vunpack.c.l.b16 %v285
      %v365 = vunpack.c.l.b16 %v286
      %v366 = vunpack.c.l.b16 %v287
      %v367 = vunpack.c.l.b16 %v288
      %v368 = vunpack.c.l.b16 %v289
      %v369 = vpack.c.b16 %v362, %v361
      %v370 = vpack.c.b16 %v364, %v363
      %v371 = vpack.c.b16 %v366, %v365
      %v372 = vpack.c.b16 %v368, %v367
      %v377 = vsel %vm335, %v303, 0
      %379 = vmatpush.bf16.msra.mxu0 0
      %380 = vmatpush.bf16.msra.mxu0 0
      %381 = vmatpush.bf16.msra.mxu0 0
      %382 = vmatpush.bf16.msra.mxu0 0
      %383 = vmatpush.bf16.msra.mxu0 %v372
      %384 = vmatpush.bf16.msra.mxu0 %v371
      %385 = vmatpush.bf16.msra.mxu0 %v370
      %386 = vmatpush.bf16.msra.mxu0 %v369
      %387 = vmatmul.bf16.gmra.mxu0 %v377
      %v388 = vpop.f32.mrf.mxu0
      %v389 = vadd.f32 %v349, %v388
      %v390 = vpop.f32.mrf.mxu0
      %v391 = vadd.f32 %v351, %v390
      %392 = vdwg.mxu0
      %s393 = scalar_lea.vmem %s1, 64
      %v394 = vld [vmem:[%s393] sm:$0xf]
      %v395 = vld [vmem:[%s393 + $0x4] sm:$0xf]
      %v396 = vld [vmem:[%s393 + $0x8] sm:$0xf]
      %v397 = vld [vmem:[%s393 + $0xc] sm:$0xf]
      %v398 = vld [vmem:[%s393 + $0x10] sm:$0xf]
      %v399 = vld [vmem:[%s393 + $0x14] sm:$0xf]
      %v400 = vld [vmem:[%s393 + $0x18] sm:$0xf]
      %v401 = vld [vmem:[%s393 + $0x1c] sm:$0xf]
      %v402 = vrot.slane %v303, 1
      %v411 = vunpack.c.l.b16 %v394
      %v412 = vunpack.c.l.b16 %v395
      %v413 = vunpack.c.l.b16 %v396
      %v414 = vunpack.c.l.b16 %v397
      %v415 = vunpack.c.l.b16 %v398
      %v416 = vunpack.c.l.b16 %v399
      %v417 = vunpack.c.l.b16 %v400
      %v418 = vunpack.c.l.b16 %v401
      %v419 = vpack.c.b16 %v412, %v411
      %v420 = vpack.c.b16 %v414, %v413
      %v421 = vpack.c.b16 %v416, %v415
      %v422 = vpack.c.b16 %v418, %v417
      %v428 = vsel %vm335, %v402, 0
      %430 = vmatpush.bf16.msra.mxu0 0
      %431 = vmatpush.bf16.msra.mxu0 0
      %432 = vmatpush.bf16.msra.mxu0 0
      %433 = vmatpush.bf16.msra.mxu0 0
      %434 = vmatpush.bf16.msra.mxu0 %v422
      %435 = vmatpush.bf16.msra.mxu0 %v421
      %436 = vmatpush.bf16.msra.mxu0 %v420
      %437 = vmatpush.bf16.msra.mxu0 %v419
      %438 = vmatmul.bf16.gmra.mxu0 %v428
      %v439 = vpop.f32.mrf.mxu0
      %v440 = vadd.f32 0.0, %v439
      %v441 = vpop.f32.mrf.mxu0
      %v442 = vadd.f32 0.0, %v441
      %443 = vdwg.mxu0
      %v444 = vadd.f32 %v389, %v440
      %v445 = vadd.f32 %v391, %v442
      %v446 = vld [vmem:[%s2] sm:$0x1]
      %v448 = vperm.slane %v446, 0
      %v450 = vadd.f32 %v444, %v448
      %v451 = vadd.f32 %v445, %v448
      %v452 = vmax.f32 %v450, 0.0
      %v453 = vmax.f32 %v451, 0.0
      %v454 = vpack.c.bf16 %v452, %v452
      %v455 = vpack.c.bf16 %v453, %v453
      %v456 = vld [vmem:[%s3] sm:$0xf]
      %v457 = vld [vmem:[%s3 + $0x4] sm:$0xf]
      %v458 = vld [vmem:[%s3 + $0x8] sm:$0xf]
      %v459 = vld [vmem:[%s3 + $0xc] sm:$0xf]
      %v460 = vld [vmem:[%s3 + $0x10] sm:$0xf]
      %v461 = vld [vmem:[%s3 + $0x14] sm:$0xf]
      %v462 = vld [vmem:[%s3 + $0x18] sm:$0xf]
      %v463 = vld [vmem:[%s3 + $0x1c] sm:$0xf]
      %v464 = vld [vmem:[%s3 + $0x20] sm:$0xf]
      %v465 = vld [vmem:[%s3 + $0x24] sm:$0xf]
      %v466 = vld [vmem:[%s3 + $0x28] sm:$0xf]
      %v467 = vld [vmem:[%s3 + $0x2c] sm:$0xf]
      %v468 = vld [vmem:[%s3 + $0x30] sm:$0xf]
      %v469 = vld [vmem:[%s3 + $0x34] sm:$0xf]
      %s470 = scalar_lea.vmem %s3, 56
      %v471 = vld [vmem:[%s470] sm:$0xf]
      %v472 = vld [vmem:[%s470 + $0x4] sm:$0xf]
      %v473 = vld [vmem:[%s470 + $0x8] sm:$0xf]
      %v474 = vld [vmem:[%s470 + $0xc] sm:$0xf]
      %v475 = vld [vmem:[%s470 + $0x10] sm:$0xf]
      %v476 = vld [vmem:[%s470 + $0x14] sm:$0xf]
      %v477 = vld [vmem:[%s470 + $0x18] sm:$0xf]
      %v478 = vld [vmem:[%s470 + $0x1c] sm:$0xf]
      %v479 = vld [vmem:[%s470 + $0x20] sm:$0xf]
      %v480 = vld [vmem:[%s470 + $0x24] sm:$0xf]
      %v481 = vld [vmem:[%s470 + $0x28] sm:$0xf]
      %v482 = vld [vmem:[%s470 + $0x2c] sm:$0xf]
      %v483 = vld [vmem:[%s470 + $0x30] sm:$0xf]
      %v484 = vld [vmem:[%s470 + $0x34] sm:$0xf]
      %v487 = vunpack.c.l.b16 %v454
      %v488 = vunpack.c.l.b16 %v455
      %v489 = vpack.c.b16 %v488, %v487
      %v491 = vshrl.u32 %v489, 16
      %v493 = vshll.u32 %v489, 16
      %v495 = vrot.slane %v493, 1
      %v496 = vor.u32 %v491, %v495
      %v511 = vunpack.c.l.b16 %v471
      %v512 = vunpack.c.l.b16 %v472
      %v513 = vunpack.c.l.b16 %v473
      %v514 = vunpack.c.l.b16 %v474
      %v515 = vunpack.c.l.b16 %v475
      %v516 = vunpack.c.l.b16 %v476
      %v517 = vunpack.c.l.b16 %v477
      %v518 = vunpack.c.l.b16 %v478
      %v519 = vunpack.c.l.b16 %v479
      %v520 = vunpack.c.l.b16 %v480
      %v521 = vunpack.c.l.b16 %v481
      %v522 = vunpack.c.l.b16 %v482
      %v523 = vunpack.c.l.b16 %v483
      %v524 = vunpack.c.l.b16 %v484
      %v525 = vpack.c.b16 %v512, %v511
      %v526 = vpack.c.b16 %v514, %v513
      %v527 = vpack.c.b16 %v516, %v515
      %v528 = vpack.c.b16 %v518, %v517
      %v529 = vpack.c.b16 %v520, %v519
      %v530 = vpack.c.b16 %v522, %v521
      %v531 = vpack.c.b16 %v524, %v523
      %vm539 = vcmask 916480
      %v541 = vsel %vm539, %v496, 0
      %543 = vmatpush.bf16.msra.mxu0 0
      %544 = vmatpush.bf16.msra.mxu0 %v531
      %545 = vmatpush.bf16.msra.mxu0 %v530
      %546 = vmatpush.bf16.msra.mxu0 %v529
      %547 = vmatpush.bf16.msra.mxu0 %v528
      %548 = vmatpush.bf16.msra.mxu0 %v527
      %549 = vmatpush.bf16.msra.mxu0 %v526
      %550 = vmatpush.bf16.msra.mxu0 %v525
      %551 = vmatmul.bf16.gmra.mxu0 %v541
      %v552 = vpop.f32.mrf.mxu0
      %v553 = vadd.f32 0.0, %v552
      %v554 = vpop.f32.mrf.mxu0
      %v555 = vadd.f32 0.0, %v554
      %556 = vdwg.mxu0
      %v571 = vunpack.c.l.b16 %v456
      %v572 = vunpack.c.l.b16 %v457
      %v573 = vunpack.c.l.b16 %v458
      %v574 = vunpack.c.l.b16 %v459
      %v575 = vunpack.c.l.b16 %v460
      %v576 = vunpack.c.l.b16 %v461
      %v577 = vunpack.c.l.b16 %v462
      %v578 = vunpack.c.l.b16 %v463
      %v579 = vunpack.c.l.b16 %v464
      %v580 = vunpack.c.l.b16 %v465
      %v581 = vunpack.c.l.b16 %v466
      %v582 = vunpack.c.l.b16 %v467
      %v583 = vunpack.c.l.b16 %v468
      %v584 = vunpack.c.l.b16 %v469
      %v585 = vpack.c.b16 %v572, %v571
      %v586 = vpack.c.b16 %v574, %v573
      %v587 = vpack.c.b16 %v576, %v575
      %v588 = vpack.c.b16 %v578, %v577
      %v589 = vpack.c.b16 %v580, %v579
      %v590 = vpack.c.b16 %v582, %v581
      %v591 = vpack.c.b16 %v584, %v583
      %v599 = vsel %vm539, %v489, 0
      %601 = vmatpush.bf16.msra.mxu0 0
      %602 = vmatpush.bf16.msra.mxu0 %v591
      %603 = vmatpush.bf16.msra.mxu0 %v590
      %604 = vmatpush.bf16.msra.mxu0 %v589
      %605 = vmatpush.bf16.msra.mxu0 %v588
      %606 = vmatpush.bf16.msra.mxu0 %v587
      %607 = vmatpush.bf16.msra.mxu0 %v586
      %608 = vmatpush.bf16.msra.mxu0 %v585
      %609 = vmatmul.bf16.gmra.mxu0 %v599
      %v610 = vpop.f32.mrf.mxu0
      %v611 = vadd.f32 %v553, %v610
      %v612 = vpop.f32.mrf.mxu0
      %v613 = vadd.f32 %v555, %v612
      %614 = vdwg.mxu0
      %s615 = scalar_lea.vmem %s3, 112
      %v616 = vld [vmem:[%s615] sm:$0xf]
      %v617 = vld [vmem:[%s615 + $0x4] sm:$0xf]
      %v618 = vld [vmem:[%s615 + $0x8] sm:$0xf]
      %v619 = vld [vmem:[%s615 + $0xc] sm:$0xf]
      %v620 = vld [vmem:[%s615 + $0x10] sm:$0xf]
      %v621 = vld [vmem:[%s615 + $0x14] sm:$0xf]
      %v622 = vld [vmem:[%s615 + $0x18] sm:$0xf]
      %v623 = vld [vmem:[%s615 + $0x1c] sm:$0xf]
      %v624 = vld [vmem:[%s615 + $0x20] sm:$0xf]
      %v625 = vld [vmem:[%s615 + $0x24] sm:$0xf]
      %v626 = vld [vmem:[%s615 + $0x28] sm:$0xf]
      %v627 = vld [vmem:[%s615 + $0x2c] sm:$0xf]
      %v628 = vld [vmem:[%s615 + $0x30] sm:$0xf]
      %v629 = vld [vmem:[%s615 + $0x34] sm:$0xf]
      %v630 = vrot.slane %v489, 1
      %v645 = vunpack.c.l.b16 %v616
      %v646 = vunpack.c.l.b16 %v617
      %v647 = vunpack.c.l.b16 %v618
      %v648 = vunpack.c.l.b16 %v619
      %v649 = vunpack.c.l.b16 %v620
      %v650 = vunpack.c.l.b16 %v621
      %v651 = vunpack.c.l.b16 %v622
      %v652 = vunpack.c.l.b16 %v623
      %v653 = vunpack.c.l.b16 %v624
      %v654 = vunpack.c.l.b16 %v625
      %v655 = vunpack.c.l.b16 %v626
      %v656 = vunpack.c.l.b16 %v627
      %v657 = vunpack.c.l.b16 %v628
      %v658 = vunpack.c.l.b16 %v629
      %v659 = vpack.c.b16 %v646, %v645
      %v660 = vpack.c.b16 %v648, %v647
      %v661 = vpack.c.b16 %v650, %v649
      %v662 = vpack.c.b16 %v652, %v651
      %v663 = vpack.c.b16 %v654, %v653
      %v664 = vpack.c.b16 %v656, %v655
      %v665 = vpack.c.b16 %v658, %v657
      %v674 = vsel %vm539, %v630, 0
      %676 = vmatpush.bf16.msra.mxu0 0
      %677 = vmatpush.bf16.msra.mxu0 %v665
      %678 = vmatpush.bf16.msra.mxu0 %v664
      %679 = vmatpush.bf16.msra.mxu0 %v663
      %680 = vmatpush.bf16.msra.mxu0 %v662
      %681 = vmatpush.bf16.msra.mxu0 %v661
      %682 = vmatpush.bf16.msra.mxu0 %v660
      %683 = vmatpush.bf16.msra.mxu0 %v659
      %684 = vmatmul.bf16.gmra.mxu0 %v674
      %v685 = vpop.f32.mrf.mxu0
      %v686 = vadd.f32 0.0, %v685
      %v687 = vpop.f32.mrf.mxu0
      %v688 = vadd.f32 0.0, %v687
      %689 = vdwg.mxu0
      %v690 = vadd.f32 %v611, %v686
      %v691 = vadd.f32 %v613, %v688
      %v692 = vld [vmem:[%s4] sm:$0x1]
      %v694 = vperm.slane %v692, 0
      %v696 = vadd.f32 %v690, %v694
      %v697 = vadd.f32 %v691, %v694
      %v698 = vmax.f32 %v696, 0.0
      %v699 = vmax.f32 %v697, 0.0
      %v700 = vpack.c.bf16 %v699, %v698
      %v701 = vld [vmem:[%s5] sm:$0xff]
      %v702 = vld [vmem:[%s5 + $0x8] sm:$0xf]
      %v703 = vld [vmem:[%s5 + $0xc] sm:$0xff]
      %v704 = vld [vmem:[%s5 + $0x14] sm:$0xf]
      %v705 = vld [vmem:[%s5 + $0x18] sm:$0xff]
      %v706 = vld [vmem:[%s5 + $0x20] sm:$0xf]
      %v707 = vld [vmem:[%s5 + $0x24] sm:$0xff]
      %v708 = vld [vmem:[%s5 + $0x2c] sm:$0xf]
      %v709 = vld [vmem:[%s5 + $0x30] sm:$0xff]
      %v710 = vld [vmem:[%s5 + $0x38] sm:$0xf]
      %v711 = vld [vmem:[%s5 + $0x3c] sm:$0xff]
      %v712 = vld [vmem:[%s5 + $0x44] sm:$0xf]
      %v713 = vld [vmem:[%s5 + $0x48] sm:$0xff]
      %v714 = vld [vmem:[%s5 + $0x50] sm:$0xf]
      %v715 = vld [vmem:[%s5 + $0x54] sm:$0xff]
      %v716 = vld [vmem:[%s5 + $0x5c] sm:$0xf]
      %v717 = vld [vmem:[%s5 + $0x60] sm:$0xff]
      %v718 = vld [vmem:[%s5 + $0x68] sm:$0xf]
      %v719 = vld [vmem:[%s5 + $0x6c] sm:$0xff]
      %v720 = vld [vmem:[%s5 + $0x74] sm:$0xf]
      %v721 = vld [vmem:[%s5 + $0x78] sm:$0xff]
      %v722 = vld [vmem:[%s5 + $0x80] sm:$0xf]
      %v723 = vld [vmem:[%s5 + $0x84] sm:$0xff]
      %v724 = vld [vmem:[%s5 + $0x8c] sm:$0xf]
      %v725 = vld [vmem:[%s6] sm:$0x7]
      %v727 = vperm.slane %v725, 0
      %v728 = vperm.slane %v725, 1
      %v729 = vperm.slane %v725, 2
      %v757 = vunpack.c.l.b16 %v701
      %v758 = vunpack.c.h.b16 %v701
      %v759 = vunpack.c.l.b16 %v702
      %v760 = vunpack.c.l.b16 %v703
      %v761 = vunpack.c.h.b16 %v703
      %v762 = vunpack.c.l.b16 %v704
      %v763 = vunpack.c.l.b16 %v705
      %v764 = vunpack.c.h.b16 %v705
      %v765 = vunpack.c.l.b16 %v706
      %v766 = vunpack.c.l.b16 %v707
      %v767 = vunpack.c.h.b16 %v707
      %v768 = vunpack.c.l.b16 %v708
      %v769 = vunpack.c.l.b16 %v709
      %v770 = vunpack.c.h.b16 %v709
      %v771 = vunpack.c.l.b16 %v710
      %v772 = vunpack.c.l.b16 %v711
      %v773 = vunpack.c.h.b16 %v711
      %v774 = vunpack.c.l.b16 %v712
      %v775 = vunpack.c.l.b16 %v713
      %v776 = vunpack.c.h.b16 %v713
      %v777 = vunpack.c.l.b16 %v714
      %v778 = vunpack.c.l.b16 %v715
      %v779 = vunpack.c.h.b16 %v715
      %v780 = vunpack.c.l.b16 %v716
      %v781 = vunpack.c.l.b16 %v717
      %v782 = vunpack.c.h.b16 %v717
      %v783 = vunpack.c.l.b16 %v718
      %v784 = vunpack.c.l.b16 %v719
      %v785 = vunpack.c.h.b16 %v719
      %v786 = vunpack.c.l.b16 %v720
      %v787 = vunpack.c.l.b16 %v721
      %v788 = vunpack.c.h.b16 %v721
      %v789 = vunpack.c.l.b16 %v722
      %v790 = vunpack.c.l.b16 %v723
      %v791 = vunpack.c.h.b16 %v723
      %v792 = vunpack.c.l.b16 %v724
      %v793 = vpack.c.b16 %v760, %v757
      %v794 = vpack.c.b16 %v761, %v758
      %v795 = vpack.c.b16 %v762, %v759
      %v796 = vpack.c.b16 %v766, %v763
      %v797 = vpack.c.b16 %v767, %v764
      %v798 = vpack.c.b16 %v768, %v765
      %v799 = vpack.c.b16 %v772, %v769
      %v800 = vpack.c.b16 %v773, %v770
      %v801 = vpack.c.b16 %v774, %v771
      %v802 = vpack.c.b16 %v778, %v775
      %v803 = vpack.c.b16 %v779, %v776
      %v804 = vpack.c.b16 %v780, %v777
      %v805 = vpack.c.b16 %v784, %v781
      %v806 = vpack.c.b16 %v785, %v782
      %v807 = vpack.c.b16 %v786, %v783
      %v808 = vpack.c.b16 %v790, %v787
      %v809 = vpack.c.b16 %v791, %v788
      %v810 = vpack.c.b16 %v792, %v789
      %vm829 = vcmask 785408
      %v831 = vsel %vm829, %v700, 0
      %833 = vmatpush.bf16.msra.mxu0 0
      %834 = vmatpush.bf16.msra.mxu0 0
      %835 = vmatpush.bf16.msra.mxu0 %v808
      %836 = vmatpush.bf16.msra.mxu0 %v805
      %837 = vmatpush.bf16.msra.mxu0 %v802
      %838 = vmatpush.bf16.msra.mxu0 %v799
      %839 = vmatpush.bf16.msra.mxu0 %v796
      %840 = vmatpush.bf16.msra.mxu0 %v793
      %841 = vmatmul.bf16.gmra.mxu0 %v831
      %v842 = vpop.f32.mrf.mxu0
      %v843 = vadd.f32 %v727, %v842
      %v844 = vpop.f32.mrf.mxu0
      %v845 = vadd.f32 %v727, %v844
      %846 = vdwg.mxu0
      %847 = vmatpush.bf16.msra.mxu0 0
      %848 = vmatpush.bf16.msra.mxu0 0
      %849 = vmatpush.bf16.msra.mxu0 %v809
      %850 = vmatpush.bf16.msra.mxu0 %v806
      %851 = vmatpush.bf16.msra.mxu0 %v803
      %852 = vmatpush.bf16.msra.mxu0 %v800
      %853 = vmatpush.bf16.msra.mxu0 %v797
      %854 = vmatpush.bf16.msra.mxu0 %v794
      %855 = vmatmul.bf16.gmra.mxu0 %v831
      %v856 = vpop.f32.mrf.mxu0
      %v857 = vadd.f32 %v728, %v856
      %v858 = vpop.f32.mrf.mxu0
      %v859 = vadd.f32 %v728, %v858
      %860 = vdwg.mxu0
      %861 = vmatpush.bf16.msra.mxu0 0
      %862 = vmatpush.bf16.msra.mxu0 0
      %863 = vmatpush.bf16.msra.mxu0 %v810
      %864 = vmatpush.bf16.msra.mxu0 %v807
      %865 = vmatpush.bf16.msra.mxu0 %v804
      %866 = vmatpush.bf16.msra.mxu0 %v801
      %867 = vmatpush.bf16.msra.mxu0 %v798
      %868 = vmatpush.bf16.msra.mxu0 %v795
      %869 = vmatmul.bf16.gmra.mxu0 %v831
      %v870 = vpop.f32.mrf.mxu0
      %v871 = vadd.f32 %v729, %v870
      %v872 = vpop.f32.mrf.mxu0
      %v873 = vadd.f32 %v729, %v872
      %874 = vdwg.mxu0
      %v875 = vmax.f32 %v843, 0.0
      %v876 = vmax.f32 %v857, 0.0
      %v877 = vmax.f32 %v871, 0.0
      %v878 = vmax.f32 %v845, 0.0
      %v879 = vmax.f32 %v859, 0.0
      %v880 = vmax.f32 %v873, 0.0
      %881 = vst [vmem:[%s278] sm:$0xff] %v875
      %882 = vst [vmem:[%s278 + $0x8] sm:$0xff] %v876
      %883 = vst [vmem:[%s278 + $0x10] sm:$0xff] %v877
      %884 = vst [vmem:[%s278 + $0x18] sm:$0xf] %v878
      %885 = vst [vmem:[%s278 + $0x20] sm:$0xf] %v879
      %886 = vst [vmem:[%s278 + $0x28] sm:$0xf] %v880
      %p887 = scmp.lt.s32.totalorder %s18, 1
      %s888 = scalar_select %p887, %s18, 1
      %s889 = smul.addr %s888, 6
      %s890 = smul.addr %s889, 8
      %s891 = scalar_lea.vmem %s7, %s890
      // Predicated region
      $region49: #{expansive_unit1_forward.1} parent=47 // pred_check
        %p892 = pneg %p188
      $region50: #{expansive_unit1_forward.1} parent=47 // pred_check_branch
        %894 = sbr.rel (%p892) target = $region52
      $region51: #{expansive_unit1_forward.1} parent=47 // pred_region
        _
      $region52: #{expansive_unit1_forward.1} parent=47 // pred_fallthru
        _
    $region48: #{expansive_unit1_forward.1} parent=5 // pred_fallthru
      _
    %p895 = scmp.le.s32.totalorder 2, %s13
    // Predicated region
    $region53: #{expansive_unit1_forward.1} parent=5 // pred_check
      %p896 = pneg %p895
    $region54: #{expansive_unit1_forward.1} parent=5 // pred_check_branch
      %898 = sbr.rel (%p896) target = $region56
    $region55: #{expansive_unit1_forward.1} parent=5 // pred_region
      %s899 = ssub.s32 %s13, 2
      // Predicated region
      $region57: #{expansive_unit1_forward.1} parent=55 // pred_check
        %p900 = pneg %p194
      $region58: #{expansive_unit1_forward.1} parent=55 // pred_check_branch
        %902 = sbr.rel (%p900) target = $region60
      $region59: #{expansive_unit1_forward.1} parent=55 // pred_region
        %p903 = scmp.lt.s32.totalorder %s19, 1
        %s904 = scalar_select %p903, %s19, 1
        %s905 = smul.addr %s904, 6
        %s906 = smul.addr %s905, 8
        %s907 = scalar_lea.vmem %s7, %s906
      $region60: #{expansive_unit1_forward.1} parent=55 // pred_fallthru
        _
    $region56: #{expansive_unit1_forward.1} parent=5 // pred_fallthru
      _
  $region6: #{expansive_unit1_forward.1} parent=0 // loop_footer
    %s17 = sadd.s32 1, %s13
  $region7: #{expansive_unit1_forward.1} parent=0 // loop_footer_branch
    %12 = sbr.rel target = $region3
  $region8: #{expansive_unit1_forward.1} parent=0 // loop_exit
    _

</llo_original>
